<compile_context>
chip_gen: v7x
topology: tpu7x:2x2x1
jax: 0.10.0
libtpu: 0.0.40
codegen_flags: <defaults>
</compile_context>

<pallas_src>
import functools

import jax
import jax.numpy as jnp
from jax.experimental import pallas as pl
from jax.experimental.pallas import tpu as pltpu

_NEG_SLOPE = 0.01   # F.leaky_relu default negative_slope
_LANE = 128
_SUBLANE = 8


def _round_up(x, m):
    return ((x + m - 1) // m) * m


def _leaky_relu(x, negative_slope=_NEG_SLOPE):
    # one vmul + one vmax instead of vcmp + vmul + vsel
    return jnp.maximum(x, negative_slope * x)


def dqn_kernel(x_ref, w_ref, b_ref, out_ref, *, n_layers, matmul_dtype):
    """Fused MLP: h = leaky_relu(h @ W_l + b_l) for l < L-1; final layer linear.

    x_ref:   (TB, P)        activation tile (batch on sublanes, padded feats on lanes)
    w_ref:   (L, P, P)      packed, padded weight slab (VMEM-resident)
    b_ref:   (L, 1, P)      packed, padded bias slab   (VMEM-resident)
    out_ref: (TB, P)        padded Q-value tile
    """
    h = x_ref[...].astype(jnp.float32)                       # (TB, P)
    for l in range(n_layers):                                # static unroll
        lhs = h.astype(matmul_dtype)
        rhs = w_ref[l].astype(matmul_dtype)                  # static slice -> (P, P)
        h = jnp.dot(lhs, rhs, preferred_element_type=jnp.float32) + b_ref[l]
        if l < n_layers - 1:
            h = _leaky_relu(h)                               # f32 (safe on v5e too)
    out_ref[...] = h.astype(out_ref.dtype)


@functools.partial(jax.jit, static_argnames=("block_batch", "matmul_dtype"))
def dqn_forward(x, params, *, block_batch=256, matmul_dtype=jnp.float32):
    """x: (B, in_features). params: list of (W, b) with W shaped (in, out).

    Returns (B, n_actions) float32. Set matmul_dtype=jnp.bfloat16 on v6e/v7x
    for large batches (f32 accumulation is kept either way).
    """
    x = x.astype(jnp.float32)
    B, in_features = x.shape
    n_layers = len(params)
    n_actions = params[-1][0].shape[1]

    # One common padded width covering every layer's in/out features, so all
    # weights pack into a single (L, P, P) slab and activations stay (TB, P).
    dims = [in_features] + [w.shape[1] for (w, _) in params]
    P = _round_up(max(dims), _LANE)

    w_pads, b_pads = [], []
    for (w, b) in params:
        fi, fo = w.shape
        w_pads.append(jnp.pad(w.astype(jnp.float32), ((0, P - fi), (0, P - fo))))
        b_pads.append(jnp.pad(b.astype(jnp.float32), ((0, P - fo),))[None, :])
    w_slab = jnp.stack(w_pads)                               # (L, P, P)
    b_slab = jnp.stack(b_pads)                               # (L, 1, P)

    # Batch tiling: TB multiple of 8 (sublane), pad batch, parallel grid axis.
    TB = max(_SUBLANE, min(block_batch, _round_up(B, _SUBLANE)))
    TB = _round_up(TB, _SUBLANE)
    B_pad = _round_up(B, TB)

    x_pad = jnp.pad(x, ((0, B_pad - B), (0, P - in_features)))

    kernel = functools.partial(
        dqn_kernel, n_layers=n_layers, matmul_dtype=matmul_dtype)

    out = pl.pallas_call(
        kernel,
        out_shape=jax.ShapeDtypeStruct((B_pad, P), jnp.float32),
        grid=(B_pad // TB,),
        in_specs=[
            pl.BlockSpec((TB, P), lambda i: (i, 0)),               # activation tile
            pl.BlockSpec((n_layers, P, P), lambda i: (0, 0, 0)),   # weights, resident
            pl.BlockSpec((n_layers, 1, P), lambda i: (0, 0, 0)),   # biases,  resident
        ],
        out_specs=pl.BlockSpec((TB, P), lambda i: (i, 0)),
        compiler_params=pltpu.CompilerParams(
            dimension_semantics=("parallel",),                     # megacore on v7x
        ),
    )(x_pad, w_slab, b_slab)

    return out[:B, :n_actions]


def init_params(key, dims):
    """PyTorch nn.Linear default init: U(-1/sqrt(fan_in), 1/sqrt(fan_in)).
    Weights stored as (in_features, out_features)."""
    params = []
    for fan_in, fan_out in zip(dims[:-1], dims[1:]):
        key, kw, kb = jax.random.split(key, 3)
        bound = 1.0 / jnp.sqrt(fan_in)
        w = jax.random.uniform(kw, (fan_in, fan_out), jnp.float32, -bound, bound)
        b = jax.random.uniform(kb, (fan_out,), jnp.float32, -bound, bound)
        params.append((w, b))
    return params


def reference_forward(x, params):
    h = x.astype(jnp.float32)
    for i, (w, b) in enumerate(params):
        h = h @ w + b
        if i < len(params) - 1:
            h = _leaky_relu(h)
    return h


# TODO(synk): optimizer (Adam), MSELoss and device management from the PyTorch
# module are training-time machinery, not part of forward(); not translated.

if __name__ == "__main__":
    key = jax.random.PRNGKey(0)

    # Small shapes consistent with the module's constructor:
    # input_dims=(16,), layer1..4 = 32, n_actions = 4, batch = 8
    batch = 8
    input_dims = 16
    layer1_size = layer2_size = layer3_size = layer4_size = 32
    n_actions = 4

    dims = [input_dims, layer1_size, layer2_size, layer3_size, layer4_size,
            n_actions]

    key, kx = jax.random.split(key)
    x = jax.random.normal(kx, (batch, input_dims), dtype=jnp.float32)
    params = init_params(key, dims)

    q = dqn_forward(x, params)
    q = jax.block_until_ready(q)

    q_ref = reference_forward(x, params)
    assert q.shape == (batch, n_actions)
    assert jnp.allclose(q, q_ref, atol=1e-5, rtol=1e-5), "mismatch vs reference"

    print("KERNEL_OK")
</pallas_src>

<mosaic_0001>
module attributes {stable_mosaic.version = 11 : i64} {
  func.func @dqn_kernel(%arg0: i32, %arg1: memref<8x128xf32, #tpu.memory_space<vmem>>, %arg2: memref<5x128x128xf32, #tpu.memory_space<vmem>>, %arg3: memref<5x1x128xf32, #tpu.memory_space<vmem>>, %arg4: memref<8x128xf32, #tpu.memory_space<vmem>>) attributes {dimension_semantics = [#tpu.dimension_semantics<parallel>], iteration_bounds = array<i64: 1>, scalar_prefetch = 0 : i64, scratch_operands = 0 : i64, tpu.core_type = #tpu.core_type<tc>, window_params = [{transform_indices = @transform_0, window_bounds = array<i64: 8, 128>}, {pipeline_mode = #tpu.pipeline_mode<synchronous>, transform_indices = @transform_1, window_bounds = array<i64: 5, 128, 128>}, {pipeline_mode = #tpu.pipeline_mode<synchronous>, transform_indices = @transform_2, window_bounds = array<i64: 5, 1, 128>}, {transform_indices = @transform_3, window_bounds = array<i64: 8, 128>}]} {
    %c0 = arith.constant 0 : index
    %c0_0 = arith.constant 0 : index
    %0 = vector.load %arg1[%c0, %c0_0] : memref<8x128xf32, #tpu.memory_space<vmem>>, vector<8x128xf32>
    %c0_1 = arith.constant 0 : index
    %c0_2 = arith.constant 0 : index
    %c0_3 = arith.constant 0 : index
    %1 = vector.load %arg2[%c0_1, %c0_2, %c0_3] : memref<5x128x128xf32, #tpu.memory_space<vmem>>, vector<1x128x128xf32>
    %2 = vector.shape_cast %1 : vector<1x128x128xf32> to vector<128x128xf32>
    %cst = arith.constant dense<0.000000e+00> : vector<8x128xf32>
    %3 = tpu.matmul %0, %2, %cst {dimension_numbers = #tpu.dot_dimension_numbers<[1], [0], [0], [1], [0, 0, 1, 1], [], []>} : vector<8x128xf32>, vector<128x128xf32>, vector<8x128xf32> -> vector<8x128xf32>
    %c0_4 = arith.constant 0 : index
    %c0_5 = arith.constant 0 : index
    %c0_6 = arith.constant 0 : index
    %4 = vector.load %arg3[%c0_4, %c0_5, %c0_6] : memref<5x1x128xf32, #tpu.memory_space<vmem>>, vector<1x1x128xf32>
    %5 = vector.shape_cast %4 : vector<1x1x128xf32> to vector<1x128xf32>
    %6 = vector.broadcast %5 : vector<1x128xf32> to vector<8x128xf32>
    %7 = arith.addf %3, %6 : vector<8x128xf32>
    %cst_7 = arith.constant 0.00999999977 : f32
    %8 = vector.broadcast %cst_7 : f32 to vector<8x128xf32>
    %9 = arith.mulf %8, %7 : vector<8x128xf32>
    %10 = arith.maximumf %7, %9 : vector<8x128xf32>
    %c1 = arith.constant 1 : index
    %c0_8 = arith.constant 0 : index
    %c0_9 = arith.constant 0 : index
    %11 = vector.load %arg2[%c1, %c0_8, %c0_9] : memref<5x128x128xf32, #tpu.memory_space<vmem>>, vector<1x128x128xf32>
    %12 = vector.shape_cast %11 : vector<1x128x128xf32> to vector<128x128xf32>
    %cst_10 = arith.constant dense<0.000000e+00> : vector<8x128xf32>
    %13 = tpu.matmul %10, %12, %cst_10 {dimension_numbers = #tpu.dot_dimension_numbers<[1], [0], [0], [1], [0, 0, 1, 1], [], []>} : vector<8x128xf32>, vector<128x128xf32>, vector<8x128xf32> -> vector<8x128xf32>
    %c1_11 = arith.constant 1 : index
    %c0_12 = arith.constant 0 : index
    %c0_13 = arith.constant 0 : index
    %14 = vector.load %arg3[%c1_11, %c0_12, %c0_13] : memref<5x1x128xf32, #tpu.memory_space<vmem>>, vector<1x1x128xf32>
    %15 = vector.shape_cast %14 : vector<1x1x128xf32> to vector<1x128xf32>
    %16 = vector.broadcast %15 : vector<1x128xf32> to vector<8x128xf32>
    %17 = arith.addf %13, %16 : vector<8x128xf32>
    %cst_14 = arith.constant 0.00999999977 : f32
    %18 = vector.broadcast %cst_14 : f32 to vector<8x128xf32>
    %19 = arith.mulf %18, %17 : vector<8x128xf32>
    %20 = arith.maximumf %17, %19 : vector<8x128xf32>
    %c2 = arith.constant 2 : index
    %c0_15 = arith.constant 0 : index
    %c0_16 = arith.constant 0 : index
    %21 = vector.load %arg2[%c2, %c0_15, %c0_16] : memref<5x128x128xf32, #tpu.memory_space<vmem>>, vector<1x128x128xf32>
    %22 = vector.shape_cast %21 : vector<1x128x128xf32> to vector<128x128xf32>
    %cst_17 = arith.constant dense<0.000000e+00> : vector<8x128xf32>
    %23 = tpu.matmul %20, %22, %cst_17 {dimension_numbers = #tpu.dot_dimension_numbers<[1], [0], [0], [1], [0, 0, 1, 1], [], []>} : vector<8x128xf32>, vector<128x128xf32>, vector<8x128xf32> -> vector<8x128xf32>
    %c2_18 = arith.constant 2 : index
    %c0_19 = arith.constant 0 : index
    %c0_20 = arith.constant 0 : index
    %24 = vector.load %arg3[%c2_18, %c0_19, %c0_20] : memref<5x1x128xf32, #tpu.memory_space<vmem>>, vector<1x1x128xf32>
    %25 = vector.shape_cast %24 : vector<1x1x128xf32> to vector<1x128xf32>
    %26 = vector.broadcast %25 : vector<1x128xf32> to vector<8x128xf32>
    %27 = arith.addf %23, %26 : vector<8x128xf32>
    %cst_21 = arith.constant 0.00999999977 : f32
    %28 = vector.broadcast %cst_21 : f32 to vector<8x128xf32>
    %29 = arith.mulf %28, %27 : vector<8x128xf32>
    %30 = arith.maximumf %27, %29 : vector<8x128xf32>
    %c3 = arith.constant 3 : index
    %c0_22 = arith.constant 0 : index
    %c0_23 = arith.constant 0 : index
    %31 = vector.load %arg2[%c3, %c0_22, %c0_23] : memref<5x128x128xf32, #tpu.memory_space<vmem>>, vector<1x128x128xf32>
    %32 = vector.shape_cast %31 : vector<1x128x128xf32> to vector<128x128xf32>
    %cst_24 = arith.constant dense<0.000000e+00> : vector<8x128xf32>
    %33 = tpu.matmul %30, %32, %cst_24 {dimension_numbers = #tpu.dot_dimension_numbers<[1], [0], [0], [1], [0, 0, 1, 1], [], []>} : vector<8x128xf32>, vector<128x128xf32>, vector<8x128xf32> -> vector<8x128xf32>
    %c3_25 = arith.constant 3 : index
    %c0_26 = arith.constant 0 : index
    %c0_27 = arith.constant 0 : index
    %34 = vector.load %arg3[%c3_25, %c0_26, %c0_27] : memref<5x1x128xf32, #tpu.memory_space<vmem>>, vector<1x1x128xf32>
    %35 = vector.shape_cast %34 : vector<1x1x128xf32> to vector<1x128xf32>
    %36 = vector.broadcast %35 : vector<1x128xf32> to vector<8x128xf32>
    %37 = arith.addf %33, %36 : vector<8x128xf32>
    %cst_28 = arith.constant 0.00999999977 : f32
    %38 = vector.broadcast %cst_28 : f32 to vector<8x128xf32>
    %39 = arith.mulf %38, %37 : vector<8x128xf32>
    %40 = arith.maximumf %37, %39 : vector<8x128xf32>
    %c4 = arith.constant 4 : index
    %c0_29 = arith.constant 0 : index
    %c0_30 = arith.constant 0 : index
    %41 = vector.load %arg2[%c4, %c0_29, %c0_30] : memref<5x128x128xf32, #tpu.memory_space<vmem>>, vector<1x128x128xf32>
    %42 = vector.shape_cast %41 : vector<1x128x128xf32> to vector<128x128xf32>
    %cst_31 = arith.constant dense<0.000000e+00> : vector<8x128xf32>
    %43 = tpu.matmul %40, %42, %cst_31 {dimension_numbers = #tpu.dot_dimension_numbers<[1], [0], [0], [1], [0, 0, 1, 1], [], []>} : vector<8x128xf32>, vector<128x128xf32>, vector<8x128xf32> -> vector<8x128xf32>
    %c4_32 = arith.constant 4 : index
    %c0_33 = arith.constant 0 : index
    %c0_34 = arith.constant 0 : index
    %44 = vector.load %arg3[%c4_32, %c0_33, %c0_34] : memref<5x1x128xf32, #tpu.memory_space<vmem>>, vector<1x1x128xf32>
    %45 = vector.shape_cast %44 : vector<1x1x128xf32> to vector<1x128xf32>
    %46 = vector.broadcast %45 : vector<1x128xf32> to vector<8x128xf32>
    %47 = arith.addf %43, %46 : vector<8x128xf32>
    %c0_35 = arith.constant 0 : index
    %c0_36 = arith.constant 0 : index
    %48 = vector.load %arg4[%c0_35, %c0_36] : memref<8x128xf32, #tpu.memory_space<vmem>>, vector<8x128xf32>
    tpu.vector_store %arg4[%c0_35, %c0_36], %47 {strides = array<i32>} : memref<8x128xf32, #tpu.memory_space<vmem>>, vector<8x128xf32>,
    return
  }
  func.func @transform_0(%arg0: i32) -> (i32, i32) {
    %c0_i32 = arith.constant 0 : i32
    %c0_i32_0 = arith.constant 0 : i32
    return %arg0, %c0_i32 : i32, i32
  }
  func.func @transform_1(%arg0: i32) -> (i32, i32, i32) {
    %c0_i32 = arith.constant 0 : i32
    %c0_i32_0 = arith.constant 0 : i32
    %c0_i32_1 = arith.constant 0 : i32
    %c0_i32_2 = arith.constant 0 : i32
    return %c0_i32, %c0_i32_0, %c0_i32_1 : i32, i32, i32
  }
  func.func @transform_2(%arg0: i32) -> (i32, i32, i32) {
    %c0_i32 = arith.constant 0 : i32
    %c0_i32_0 = arith.constant 0 : i32
    %c0_i32_1 = arith.constant 0 : i32
    %c0_i32_2 = arith.constant 0 : i32
    return %c0_i32, %c0_i32_0, %c0_i32_1 : i32, i32, i32
  }
  func.func @transform_3(%arg0: i32) -> (i32, i32) {
    %c0_i32 = arith.constant 0 : i32
    %c0_i32_0 = arith.constant 0 : i32
    return %arg0, %c0_i32 : i32, i32
  }
}

</mosaic_0001>

<llo_original>
// kernel: dqn_forward.1
$region0: #{dqn_forward.1}
  #allocation0 [shape = 'u32[]', space=smem, size = 0x4, offset = 0x4, fixed_abs, tag = 'smem constant byte address 0x4 - core index']
  #allocation1 [shape = 'u32[144,128]{1,0:T(1,128)}', space=vmem, size = 0x12000, scoped, tag = 'internal scratch']
  %s0 = inlined_call_operand.vmem [shape: f32[8,128], index: 0, kind: input, shape index: {}]
  %s1 = inlined_call_operand.vmem [shape: f32[5,128,128], index: 1, kind: input, shape index: {}]
  %s2 = inlined_call_operand.vmem [shape: f32[5,1,128], index: 2, kind: input, shape index: {}]
  %s3 = inlined_call_operand.vmem [shape: f32[8,128], index: 3, kind: output, shape index: {}]
  %s4 = sld [smem:[#allocation0]]
  $region22: #{dqn_forward.1} parent=0
    _
  %s6 = ssub.s32 1, %s4
  %s7 = scalar_select 0, %s6, %s4
  // Predicated region
  $region2: #{dqn_forward.1} parent=0 // pred_check
    _
  $region3: #{dqn_forward.1} parent=0 // pred_check_branch
    %9 = sbr.rel (0) target = $region5
  $region4: #{dqn_forward.1} parent=0 // pred_region
    _
  $region5: #{dqn_forward.1} parent=0 // pred_fallthru
    _
  // Predicated region
  $region6: #{dqn_forward.1} parent=0 // pred_check
    _
  $region7: #{dqn_forward.1} parent=0 // pred_check_branch
    %11 = sbr.rel (0) target = $region9
  $region8: #{dqn_forward.1} parent=0 // pred_region
    _
  $region9: #{dqn_forward.1} parent=0 // pred_fallthru
    _
  // Predicated region
  $region10: #{dqn_forward.1} parent=0 // pred_check
    _
  $region11: #{dqn_forward.1} parent=0 // pred_check_branch
    %13 = sbr.rel (0) target = $region13
  $region12: #{dqn_forward.1} parent=0 // pred_region
    _
  $region13: #{dqn_forward.1} parent=0 // pred_fallthru
    _
  %v14 = vld [vmem:[%s0] sm:$0xff]
  %v15 = vld [vmem:[%s1] sm:$0xff]
  %v16 = vld [vmem:[%s1 + $0x8] sm:$0xff]
  %v17 = vld [vmem:[%s1 + $0x10] sm:$0xff]
  %v18 = vld [vmem:[%s1 + $0x18] sm:$0xff]
  %v19 = vld [vmem:[%s1 + $0x20] sm:$0xff]
  %v20 = vld [vmem:[%s1 + $0x28] sm:$0xff]
  %v21 = vld [vmem:[%s1 + $0x30] sm:$0xff]
  %v22 = vld [vmem:[%s1 + $0x38] sm:$0xff]
  %v23 = vld [vmem:[%s1 + $0x40] sm:$0xff]
  %v24 = vld [vmem:[%s1 + $0x48] sm:$0xff]
  %v25 = vld [vmem:[%s1 + $0x50] sm:$0xff]
  %v26 = vld [vmem:[%s1 + $0x58] sm:$0xff]
  %v27 = vld [vmem:[%s1 + $0x60] sm:$0xff]
  %v28 = vld [vmem:[%s1 + $0x68] sm:$0xff]
  %v29 = vld [vmem:[%s1 + $0x70] sm:$0xff]
  %v30 = vld [vmem:[%s1 + $0x78] sm:$0xff]
  %v31 = vld [vmem:[%s2] sm:$0x1]
  %v33 = vlaneseq
  %v34 = vshrl.u32 %v33, 7
  %v35 = vsub.s32 0, %v34
  %v36 = vrot.slane %v31, %v35
  %38 = vmatprep.subr.mxu0 0.0
  %39 = vmatpush1.msra.mxu0 %v15
  %40 = vmatprep.subr.mxu0 0.0
  %41 = vmatpush1.msra.mxu0 %v16
  %42 = vmatprep.subr.mxu0 0.0
  %43 = vmatpush1.msra.mxu0 %v17
  %44 = vmatprep.subr.mxu0 0.0
  %45 = vmatpush1.msra.mxu0 %v18
  %46 = vmatprep.subr.mxu0 0.0
  %47 = vmatpush1.msra.mxu0 %v19
  %48 = vmatprep.subr.mxu0 0.0
  %49 = vmatpush1.msra.mxu0 %v20
  %50 = vmatprep.subr.mxu0 0.0
  %51 = vmatpush1.msra.mxu0 %v21
  %52 = vmatprep.subr.mxu0 0.0
  %53 = vmatpush1.msra.mxu0 %v22
  %54 = vmatprep.subr.mxu0 0.0
  %55 = vmatpush1.msra.mxu0 %v23
  %56 = vmatprep.subr.mxu0 0.0
  %57 = vmatpush1.msra.mxu0 %v24
  %58 = vmatprep.subr.mxu0 0.0
  %59 = vmatpush1.msra.mxu0 %v25
  %60 = vmatprep.subr.mxu0 0.0
  %61 = vmatpush1.msra.mxu0 %v26
  %62 = vmatprep.subr.mxu0 0.0
  %63 = vmatpush1.msra.mxu0 %v27
  %64 = vmatprep.subr.mxu0 0.0
  %65 = vmatpush1.msra.mxu0 %v28
  %66 = vmatprep.subr.mxu0 0.0
  %67 = vmatpush1.msra.mxu0 %v29
  %68 = vmatprep.subr.mxu0 0.0
  %69 = vmatpush1.msra.mxu0 %v30
  %70 = vmatprep.subr.mxu0 0.0
  %71 = vmatpush1.msra.mxu0 0.0
  %72 = vmatprep.subr.mxu0 0.0
  %73 = vmatpush1.msra.mxu0 0.0
  %74 = vmatprep.subr.mxu0 0.0
  %75 = vmatpush1.msra.mxu0 0.0
  %76 = vmatprep.subr.mxu0 0.0
  %77 = vmatpush1.msra.mxu0 0.0
  %78 = vmatprep.subr.mxu0 0.0
  %79 = vmatpush1.msra.mxu0 0.0
  %80 = vmatprep.subr.mxu0 0.0
  %81 = vmatpush1.msra.mxu0 0.0
  %82 = vmatprep.subr.mxu0 0.0
  %83 = vmatpush1.msra.mxu0 0.0
  %84 = vmatprep.subr.mxu0 0.0
  %85 = vmatpush1.msra.mxu0 0.0
  %86 = vmatprep.subr.mxu0 0.0
  %87 = vmatpush1.msra.mxu0 0.0
  %88 = vmatprep.subr.mxu0 0.0
  %89 = vmatpush1.msra.mxu0 0.0
  %90 = vmatprep.subr.mxu0 0.0
  %91 = vmatpush1.msra.mxu0 0.0
  %92 = vmatprep.subr.mxu0 0.0
  %93 = vmatpush1.msra.mxu0 0.0
  %94 = vmatprep.subr.mxu0 0.0
  %95 = vmatpush1.msra.mxu0 0.0
  %96 = vmatprep.subr.mxu0 0.0
  %97 = vmatpush1.msra.mxu0 0.0
  %98 = vmatprep.subr.mxu0 0.0
  %99 = vmatpush1.msra.mxu0 0.0
  %100 = vmatprep.subr.mxu0 0.0
  %101 = vmatpush1.msra.mxu0 0.0
  %102 = vmatprep.mubr.f32.mxu0 0.0
  %103 = vmatmul.mubr.f32.gmra.mrb[0].mxu0 %v14
  %v104 = vpop.f32.mrb[0].mxu0
  %v105 = vadd.f32 %v36, %v104
  %v106 = vpop.f32.mrb[0].mxu0
  %107 = vdwg.mxu0
  %v108 = vmul.f32 %v105, 0.01
  %v109 = vmax.f32 %v105, %v108
  %s110 = scalar_lea.vmem %s1, 128
  %v111 = vld [vmem:[%s110] sm:$0xff]
  %v112 = vld [vmem:[%s110 + $0x8] sm:$0xff]
  %v113 = vld [vmem:[%s110 + $0x10] sm:$0xff]
  %v114 = vld [vmem:[%s110 + $0x18] sm:$0xff]
  %v115 = vld [vmem:[%s110 + $0x20] sm:$0xff]
  %v116 = vld [vmem:[%s110 + $0x28] sm:$0xff]
  %v117 = vld [vmem:[%s110 + $0x30] sm:$0xff]
  %v118 = vld [vmem:[%s110 + $0x38] sm:$0xff]
  %v119 = vld [vmem:[%s110 + $0x40] sm:$0xff]
  %v120 = vld [vmem:[%s110 + $0x48] sm:$0xff]
  %v121 = vld [vmem:[%s110 + $0x50] sm:$0xff]
  %v122 = vld [vmem:[%s110 + $0x58] sm:$0xff]
  %v123 = vld [vmem:[%s110 + $0x60] sm:$0xff]
  %v124 = vld [vmem:[%s110 + $0x68] sm:$0xff]
  %v125 = vld [vmem:[%s110 + $0x70] sm:$0xff]
  %v126 = vld [vmem:[%s110 + $0x78] sm:$0xff]
  %s127 = scalar_lea.vmem %s2, 1
  %v128 = vld [vmem:[%s127] sm:$0x1]
  %v130 = vlaneseq
  %v131 = vshrl.u32 %v130, 7
  %v132 = vsub.s32 0, %v131
  %v133 = vrot.slane %v128, %v132
  %135 = vmatprep.subr.mxu0 0.0
  %136 = vmatpush1.msra.mxu0 %v111
  %137 = vmatprep.subr.mxu0 0.0
  %138 = vmatpush1.msra.mxu0 %v112
  %139 = vmatprep.subr.mxu0 0.0
  %140 = vmatpush1.msra.mxu0 %v113
  %141 = vmatprep.subr.mxu0 0.0
  %142 = vmatpush1.msra.mxu0 %v114
  %143 = vmatprep.subr.mxu0 0.0
  %144 = vmatpush1.msra.mxu0 %v115
  %145 = vmatprep.subr.mxu0 0.0
  %146 = vmatpush1.msra.mxu0 %v116
  %147 = vmatprep.subr.mxu0 0.0
  %148 = vmatpush1.msra.mxu0 %v117
  %149 = vmatprep.subr.mxu0 0.0
  %150 = vmatpush1.msra.mxu0 %v118
  %151 = vmatprep.subr.mxu0 0.0
  %152 = vmatpush1.msra.mxu0 %v119
  %153 = vmatprep.subr.mxu0 0.0
  %154 = vmatpush1.msra.mxu0 %v120
  %155 = vmatprep.subr.mxu0 0.0
  %156 = vmatpush1.msra.mxu0 %v121
  %157 = vmatprep.subr.mxu0 0.0
  %158 = vmatpush1.msra.mxu0 %v122
  %159 = vmatprep.subr.mxu0 0.0
  %160 = vmatpush1.msra.mxu0 %v123
  %161 = vmatprep.subr.mxu0 0.0
  %162 = vmatpush1.msra.mxu0 %v124
  %163 = vmatprep.subr.mxu0 0.0
  %164 = vmatpush1.msra.mxu0 %v125
  %165 = vmatprep.subr.mxu0 0.0
  %166 = vmatpush1.msra.mxu0 %v126
  %167 = vmatprep.subr.mxu0 0.0
  %168 = vmatpush1.msra.mxu0 0.0
  %169 = vmatprep.subr.mxu0 0.0
  %170 = vmatpush1.msra.mxu0 0.0
  %171 = vmatprep.subr.mxu0 0.0
  %172 = vmatpush1.msra.mxu0 0.0
  %173 = vmatprep.subr.mxu0 0.0
  %174 = vmatpush1.msra.mxu0 0.0
  %175 = vmatprep.subr.mxu0 0.0
  %176 = vmatpush1.msra.mxu0 0.0
  %177 = vmatprep.subr.mxu0 0.0
  %178 = vmatpush1.msra.mxu0 0.0
  %179 = vmatprep.subr.mxu0 0.0
  %180 = vmatpush1.msra.mxu0 0.0
  %181 = vmatprep.subr.mxu0 0.0
  %182 = vmatpush1.msra.mxu0 0.0
  %183 = vmatprep.subr.mxu0 0.0
  %184 = vmatpush1.msra.mxu0 0.0
  %185 = vmatprep.subr.mxu0 0.0
  %186 = vmatpush1.msra.mxu0 0.0
  %187 = vmatprep.subr.mxu0 0.0
  %188 = vmatpush1.msra.mxu0 0.0
  %189 = vmatprep.subr.mxu0 0.0
  %190 = vmatpush1.msra.mxu0 0.0
  %191 = vmatprep.subr.mxu0 0.0
  %192 = vmatpush1.msra.mxu0 0.0
  %193 = vmatprep.subr.mxu0 0.0
  %194 = vmatpush1.msra.mxu0 0.0
  %195 = vmatprep.subr.mxu0 0.0
  %196 = vmatpush1.msra.mxu0 0.0
  %197 = vmatprep.subr.mxu0 0.0
  %198 = vmatpush1.msra.mxu0 0.0
  %199 = vmatprep.mubr.f32.mxu0 0.0
  %200 = vmatmul.mubr.f32.gmra.mrb[0].mxu0 %v109
  %v201 = vpop.f32.mrb[0].mxu0
  %v202 = vadd.f32 %v133, %v201
  %v203 = vpop.f32.mrb[0].mxu0
  %204 = vdwg.mxu0
  %v205 = vmul.f32 %v202, 0.01
  %v206 = vmax.f32 %v202, %v205
  %s207 = scalar_lea.vmem %s1, 256
  %v208 = vld [vmem:[%s207] sm:$0xff]
  %v209 = vld [vmem:[%s207 + $0x8] sm:$0xff]
  %v210 = vld [vmem:[%s207 + $0x10] sm:$0xff]
  %v211 = vld [vmem:[%s207 + $0x18] sm:$0xff]
  %v212 = vld [vmem:[%s207 + $0x20] sm:$0xff]
  %v213 = vld [vmem:[%s207 + $0x28] sm:$0xff]
  %v214 = vld [vmem:[%s207 + $0x30] sm:$0xff]
  %v215 = vld [vmem:[%s207 + $0x38] sm:$0xff]
  %v216 = vld [vmem:[%s207 + $0x40] sm:$0xff]
  %v217 = vld [vmem:[%s207 + $0x48] sm:$0xff]
  %v218 = vld [vmem:[%s207 + $0x50] sm:$0xff]
  %v219 = vld [vmem:[%s207 + $0x58] sm:$0xff]
  %v220 = vld [vmem:[%s207 + $0x60] sm:$0xff]
  %v221 = vld [vmem:[%s207 + $0x68] sm:$0xff]
  %v222 = vld [vmem:[%s207 + $0x70] sm:$0xff]
  %v223 = vld [vmem:[%s207 + $0x78] sm:$0xff]
  %s224 = scalar_lea.vmem %s2, 2
  %v225 = vld [vmem:[%s224] sm:$0x1]
  %v227 = vlaneseq
  %v228 = vshrl.u32 %v227, 7
  %v229 = vsub.s32 0, %v228
  %v230 = vrot.slane %v225, %v229
  %232 = vmatprep.subr.mxu0 0.0
  %233 = vmatpush1.msra.mxu0 %v208
  %234 = vmatprep.subr.mxu0 0.0
  %235 = vmatpush1.msra.mxu0 %v209
  %236 = vmatprep.subr.mxu0 0.0
  %237 = vmatpush1.msra.mxu0 %v210
  %238 = vmatprep.subr.mxu0 0.0
  %239 = vmatpush1.msra.mxu0 %v211
  %240 = vmatprep.subr.mxu0 0.0
  %241 = vmatpush1.msra.mxu0 %v212
  %242 = vmatprep.subr.mxu0 0.0
  %243 = vmatpush1.msra.mxu0 %v213
  %244 = vmatprep.subr.mxu0 0.0
  %245 = vmatpush1.msra.mxu0 %v214
  %246 = vmatprep.subr.mxu0 0.0
  %247 = vmatpush1.msra.mxu0 %v215
  %248 = vmatprep.subr.mxu0 0.0
  %249 = vmatpush1.msra.mxu0 %v216
  %250 = vmatprep.subr.mxu0 0.0
  %251 = vmatpush1.msra.mxu0 %v217
  %252 = vmatprep.subr.mxu0 0.0
  %253 = vmatpush1.msra.mxu0 %v218
  %254 = vmatprep.subr.mxu0 0.0
  %255 = vmatpush1.msra.mxu0 %v219
  %256 = vmatprep.subr.mxu0 0.0
  %257 = vmatpush1.msra.mxu0 %v220
  %258 = vmatprep.subr.mxu0 0.0
  %259 = vmatpush1.msra.mxu0 %v221
  %260 = vmatprep.subr.mxu0 0.0
  %261 = vmatpush1.msra.mxu0 %v222
  %262 = vmatprep.subr.mxu0 0.0
  %263 = vmatpush1.msra.mxu0 %v223
  %264 = vmatprep.subr.mxu0 0.0
  %265 = vmatpush1.msra.mxu0 0.0
  %266 = vmatprep.subr.mxu0 0.0
  %267 = vmatpush1.msra.mxu0 0.0
  %268 = vmatprep.subr.mxu0 0.0
  %269 = vmatpush1.msra.mxu0 0.0
  %270 = vmatprep.subr.mxu0 0.0
  %271 = vmatpush1.msra.mxu0 0.0
  %272 = vmatprep.subr.mxu0 0.0
  %273 = vmatpush1.msra.mxu0 0.0
  %274 = vmatprep.subr.mxu0 0.0
  %275 = vmatpush1.msra.mxu0 0.0
  %276 = vmatprep.subr.mxu0 0.0
  %277 = vmatpush1.msra.mxu0 0.0
  %278 = vmatprep.subr.mxu0 0.0
  %279 = vmatpush1.msra.mxu0 0.0
  %280 = vmatprep.subr.mxu0 0.0
  %281 = vmatpush1.msra.mxu0 0.0
  %282 = vmatprep.subr.mxu0 0.0
  %283 = vmatpush1.msra.mxu0 0.0
  %284 = vmatprep.subr.mxu0 0.0
  %285 = vmatpush1.msra.mxu0 0.0
  %286 = vmatprep.subr.mxu0 0.0
  %287 = vmatpush1.msra.mxu0 0.0
  %288 = vmatprep.subr.mxu0 0.0
  %289 = vmatpush1.msra.mxu0 0.0
  %290 = vmatprep.subr.mxu0 0.0
  %291 = vmatpush1.msra.mxu0 0.0
  %292 = vmatprep.subr.mxu0 0.0
  %293 = vmatpush1.msra.mxu0 0.0
  %294 = vmatprep.subr.mxu0 0.0
  %295 = vmatpush1.msra.mxu0 0.0
  %296 = vmatprep.mubr.f32.mxu0 0.0
  %297 = vmatmul.mubr.f32.gmra.mrb[0].mxu0 %v206
  %v298 = vpop.f32.mrb[0].mxu0
  %v299 = vadd.f32 %v230, %v298
  %v300 = vpop.f32.mrb[0].mxu0
  %301 = vdwg.mxu0
  %v302 = vmul.f32 %v299, 0.01
  %v303 = vmax.f32 %v299, %v302
  %s304 = scalar_lea.vmem %s1, 384
  %v305 = vld [vmem:[%s304] sm:$0xff]
  %v306 = vld [vmem:[%s304 + $0x8] sm:$0xff]
  %v307 = vld [vmem:[%s304 + $0x10] sm:$0xff]
  %v308 = vld [vmem:[%s304 + $0x18] sm:$0xff]
  %v309 = vld [vmem:[%s304 + $0x20] sm:$0xff]
  %v310 = vld [vmem:[%s304 + $0x28] sm:$0xff]
  %v311 = vld [vmem:[%s304 + $0x30] sm:$0xff]
  %v312 = vld [vmem:[%s304 + $0x38] sm:$0xff]
  %v313 = vld [vmem:[%s304 + $0x40] sm:$0xff]
  %v314 = vld [vmem:[%s304 + $0x48] sm:$0xff]
  %v315 = vld [vmem:[%s304 + $0x50] sm:$0xff]
  %v316 = vld [vmem:[%s304 + $0x58] sm:$0xff]
  %v317 = vld [vmem:[%s304 + $0x60] sm:$0xff]
  %v318 = vld [vmem:[%s304 + $0x68] sm:$0xff]
  %v319 = vld [vmem:[%s304 + $0x70] sm:$0xff]
  %v320 = vld [vmem:[%s304 + $0x78] sm:$0xff]
  %s321 = scalar_lea.vmem %s2, 3
  %v322 = vld [vmem:[%s321] sm:$0x1]
  %v324 = vlaneseq
  %v325 = vshrl.u32 %v324, 7
  %v326 = vsub.s32 0, %v325
  %v327 = vrot.slane %v322, %v326
  %329 = vmatprep.subr.mxu0 0.0
  %330 = vmatpush1.msra.mxu0 %v305
  %331 = vmatprep.subr.mxu0 0.0
  %332 = vmatpush1.msra.mxu0 %v306
  %333 = vmatprep.subr.mxu0 0.0
  %334 = vmatpush1.msra.mxu0 %v307
  %335 = vmatprep.subr.mxu0 0.0
  %336 = vmatpush1.msra.mxu0 %v308
  %337 = vmatprep.subr.mxu0 0.0
  %338 = vmatpush1.msra.mxu0 %v309
  %339 = vmatprep.subr.mxu0 0.0
  %340 = vmatpush1.msra.mxu0 %v310
  %341 = vmatprep.subr.mxu0 0.0
  %342 = vmatpush1.msra.mxu0 %v311
  %343 = vmatprep.subr.mxu0 0.0
  %344 = vmatpush1.msra.mxu0 %v312
  %345 = vmatprep.subr.mxu0 0.0
  %346 = vmatpush1.msra.mxu0 %v313
  %347 = vmatprep.subr.mxu0 0.0
  %348 = vmatpush1.msra.mxu0 %v314
  %349 = vmatprep.subr.mxu0 0.0
  %350 = vmatpush1.msra.mxu0 %v315
  %351 = vmatprep.subr.mxu0 0.0
  %352 = vmatpush1.msra.mxu0 %v316
  %353 = vmatprep.subr.mxu0 0.0
  %354 = vmatpush1.msra.mxu0 %v317
  %355 = vmatprep.subr.mxu0 0.0
  %356 = vmatpush1.msra.mxu0 %v318
  %357 = vmatprep.subr.mxu0 0.0
  %358 = vmatpush1.msra.mxu0 %v319
  %359 = vmatprep.subr.mxu0 0.0
  %360 = vmatpush1.msra.mxu0 %v320
  %361 = vmatprep.subr.mxu0 0.0
  %362 = vmatpush1.msra.mxu0 0.0
  %363 = vmatprep.subr.mxu0 0.0
  %364 = vmatpush1.msra.mxu0 0.0
  %365 = vmatprep.subr.mxu0 0.0
  %366 = vmatpush1.msra.mxu0 0.0
  %367 = vmatprep.subr.mxu0 0.0
  %368 = vmatpush1.msra.mxu0 0.0
  %369 = vmatprep.subr.mxu0 0.0
  %370 = vmatpush1.msra.mxu0 0.0
  %371 = vmatprep.subr.mxu0 0.0
  %372 = vmatpush1.msra.mxu0 0.0
  %373 = vmatprep.subr.mxu0 0.0
  %374 = vmatpush1.msra.mxu0 0.0
  %375 = vmatprep.subr.mxu0 0.0
  %376 = vmatpush1.msra.mxu0 0.0
  %377 = vmatprep.subr.mxu0 0.0
  %378 = vmatpush1.msra.mxu0 0.0
  %379 = vmatprep.subr.mxu0 0.0
  %380 = vmatpush1.msra.mxu0 0.0
  %381 = vmatprep.subr.mxu0 0.0
  %382 = vmatpush1.msra.mxu0 0.0
  %383 = vmatprep.subr.mxu0 0.0
  %384 = vmatpush1.msra.mxu0 0.0
  %385 = vmatprep.subr.mxu0 0.0
  %386 = vmatpush1.msra.mxu0 0.0
  %387 = vmatprep.subr.mxu0 0.0
  %388 = vmatpush1.msra.mxu0 0.0
  %389 = vmatprep.subr.mxu0 0.0
  %390 = vmatpush1.msra.mxu0 0.0
  %391 = vmatprep.subr.mxu0 0.0
  %392 = vmatpush1.msra.mxu0 0.0
  %393 = vmatprep.mubr.f32.mxu0 0.0
  %394 = vmatmul.mubr.f32.gmra.mrb[0].mxu0 %v303
  %v395 = vpop.f32.mrb[0].mxu0
  %v396 = vadd.f32 %v327, %v395
  %v397 = vpop.f32.mrb[0].mxu0
  %398 = vdwg.mxu0
  %v399 = vmul.f32 %v396, 0.01
  %v400 = vmax.f32 %v396, %v399
  %s401 = scalar_lea.vmem %s1, 512
  %v402 = vld [vmem:[%s401] sm:$0xff]
  %v403 = vld [vmem:[%s401 + $0x8] sm:$0xff]
  %v404 = vld [vmem:[%s401 + $0x10] sm:$0xff]
  %v405 = vld [vmem:[%s401 + $0x18] sm:$0xff]
  %v406 = vld [vmem:[%s401 + $0x20] sm:$0xff]
  %v407 = vld [vmem:[%s401 + $0x28] sm:$0xff]
  %v408 = vld [vmem:[%s401 + $0x30] sm:$0xff]
  %v409 = vld [vmem:[%s401 + $0x38] sm:$0xff]
  %v410 = vld [vmem:[%s401 + $0x40] sm:$0xff]
  %v411 = vld [vmem:[%s401 + $0x48] sm:$0xff]
  %v412 = vld [vmem:[%s401 + $0x50] sm:$0xff]
  %v413 = vld [vmem:[%s401 + $0x58] sm:$0xff]
  %v414 = vld [vmem:[%s401 + $0x60] sm:$0xff]
  %v415 = vld [vmem:[%s401 + $0x68] sm:$0xff]
  %v416 = vld [vmem:[%s401 + $0x70] sm:$0xff]
  %v417 = vld [vmem:[%s401 + $0x78] sm:$0xff]
  %s418 = scalar_lea.vmem %s2, 4
  %v419 = vld [vmem:[%s418] sm:$0x1]
  %v421 = vlaneseq
  %v422 = vshrl.u32 %v421, 7
  %v423 = vsub.s32 0, %v422
  %v424 = vrot.slane %v419, %v423
  %426 = vmatprep.subr.mxu0 0.0
  %427 = vmatpush1.msra.mxu0 %v402
  %428 = vmatprep.subr.mxu0 0.0
  %429 = vmatpush1.msra.mxu0 %v403
  %430 = vmatprep.subr.mxu0 0.0
  %431 = vmatpush1.msra.mxu0 %v404
  %432 = vmatprep.subr.mxu0 0.0
  %433 = vmatpush1.msra.mxu0 %v405
  %434 = vmatprep.subr.mxu0 0.0
  %435 = vmatpush1.msra.mxu0 %v406
  %436 = vmatprep.subr.mxu0 0.0
  %437 = vmatpush1.msra.mxu0 %v407
  %438 = vmatprep.subr.mxu0 0.0
  %439 = vmatpush1.msra.mxu0 %v408
  %440 = vmatprep.subr.mxu0 0.0
  %441 = vmatpush1.msra.mxu0 %v409
  %442 = vmatprep.subr.mxu0 0.0
  %443 = vmatpush1.msra.mxu0 %v410
  %444 = vmatprep.subr.mxu0 0.0
  %445 = vmatpush1.msra.mxu0 %v411
  %446 = vmatprep.subr.mxu0 0.0
  %447 = vmatpush1.msra.mxu0 %v412
  %448 = vmatprep.subr.mxu0 0.0
  %449 = vmatpush1.msra.mxu0 %v413
  %450 = vmatprep.subr.mxu0 0.0
  %451 = vmatpush1.msra.mxu0 %v414
  %452 = vmatprep.subr.mxu0 0.0
  %453 = vmatpush1.msra.mxu0 %v415
  %454 = vmatprep.subr.mxu0 0.0
  %455 = vmatpush1.msra.mxu0 %v416
  %456 = vmatprep.subr.mxu0 0.0
  %457 = vmatpush1.msra.mxu0 %v417
  %458 = vmatprep.subr.mxu0 0.0
  %459 = vmatpush1.msra.mxu0 0.0
  %460 = vmatprep.subr.mxu0 0.0
  %461 = vmatpush1.msra.mxu0 0.0
  %462 = vmatprep.subr.mxu0 0.0
  %463 = vmatpush1.msra.mxu0 0.0
  %464 = vmatprep.subr.mxu0 0.0
  %465 = vmatpush1.msra.mxu0 0.0
  %466 = vmatprep.subr.mxu0 0.0
  %467 = vmatpush1.msra.mxu0 0.0
  %468 = vmatprep.subr.mxu0 0.0
  %469 = vmatpush1.msra.mxu0 0.0
  %470 = vmatprep.subr.mxu0 0.0
  %471 = vmatpush1.msra.mxu0 0.0
  %472 = vmatprep.subr.mxu0 0.0
  %473 = vmatpush1.msra.mxu0 0.0
  %474 = vmatprep.subr.mxu0 0.0
  %475 = vmatpush1.msra.mxu0 0.0
  %476 = vmatprep.subr.mxu0 0.0
  %477 = vmatpush1.msra.mxu0 0.0
  %478 = vmatprep.subr.mxu0 0.0
  %479 = vmatpush1.msra.mxu0 0.0
  %480 = vmatprep.subr.mxu0 0.0
  %481 = vmatpush1.msra.mxu0 0.0
  %482 = vmatprep.subr.mxu0 0.0
  %483 = vmatpush1.msra.mxu0 0.0
  %484 = vmatprep.subr.mxu0 0.0
  %485 = vmatpush1.msra.mxu0 0.0
  %486 = vmatprep.subr.mxu0 0.0
  %487 = vmatpush1.msra.mxu0 0.0
  %488 = vmatprep.subr.mxu0 0.0
  %489 = vmatpush1.msra.mxu0 0.0
  %490 = vmatprep.mubr.f32.mxu0 0.0
  %491 = vmatmul.mubr.f32.gmra.mrb[0].mxu0 %v400
  %v492 = vpop.f32.mrb[0].mxu0
  %v493 = vadd.f32 %v424, %v492
  %v494 = vpop.f32.mrb[0].mxu0
  %495 = vdwg.mxu0
  %496 = vst [vmem:[%s3] sm:$0xff] %v493
  // Predicated region
  $region14: #{dqn_forward.1} parent=0 // pred_check
    _
  $region15: #{dqn_forward.1} parent=0 // pred_check_branch
    %498 = sbr.rel (0) target = $region17
  $region16: #{dqn_forward.1} parent=0 // pred_region
    _
  $region17: #{dqn_forward.1} parent=0 // pred_fallthru
    _
  // Predicated region
  $region18: #{dqn_forward.1} parent=0 // pred_check
    _
  $region19: #{dqn_forward.1} parent=0 // pred_check_branch
    %500 = sbr.rel (0) target = $region21
  $region20: #{dqn_forward.1} parent=0 // pred_region
    _
  $region21: #{dqn_forward.1} parent=0 // pred_fallthru
    _

</llo_original>
